<compile_context>
chip_gen: v7x
topology: tpu7x:2x2x1
jax: 0.10.0
libtpu: 0.0.40
codegen_flags: <defaults>
</compile_context>

<pallas_src>
import math

import jax
import jax.numpy as jnp
from jax.experimental import pallas as pl
from jax.experimental.pallas import tpu as pltpu


def _drop_path_kernel(scale_ref, x_ref, o_ref):
    # scale_ref: (TB, 1) float32 -- 0.0 (sample dropped) or 1/keep_prob.
    # x_ref / o_ref: (TB, TND) lane-dense block of the flattened input.
    # Multiply in the native dtype (cast only the tiny (TB, 1) scale) to keep
    # vreg/VMEM footprint minimal for bf16/int8 inputs.
    o_ref[...] = x_ref[...] * scale_ref[...].astype(o_ref.dtype)


def _round_up(x, m):
    return ((x + m - 1) // m) * m


def _choose_split(shape):
    """Split dims into (rows, cols) for a 2-D lane-dense layout.

    cols = smallest trailing-dim product that is a multiple of 128 (fully
    lane-dense), rows = product of the remaining leading dims (maximizes
    sublane utilization and grid axis 0 for v7x TC sharding). Falls back to
    (batch, prod(rest)) when no trailing product is a multiple of 128.
    """
    ndim = len(shape)
    if ndim == 1:
        return shape[0], 1
    best_k = 1
    for k in range(ndim - 1, 0, -1):  # smallest suffix first
        cols = math.prod(shape[k:])
        if cols % 128 == 0:
            best_k = k
            break
    return math.prod(shape[:best_k]), math.prod(shape[best_k:])


def _pick_block(rows, cols, itemsize, target_bytes):
    """Pick (TB, TND) obeying the (sublane, 128) layout rule and a VMEM budget."""
    pack = {1: 32, 2: 16}.get(itemsize, 8)          # dtype-aware sublane pack
    target_elems = max(pack * 128, target_bytes // itemsize)

    # Lane tile: multiple of 128 (edge blocks masked via cdiv grid), or the
    # full last dim when it is smaller than 128 (layout-legal).
    if cols < 128:
        tnd = cols
    else:
        tnd = (cols // 128) * 128
        max_w = max(128, ((target_elems // pack) // 128) * 128)
        tnd = min(tnd, max_w)

    # Sublane tile: multiple of the pack (edge masked), or the full row dim.
    if rows < pack:
        tb = rows
    else:
        tb = min(_round_up(rows, pack),
                 max(pack, ((target_elems // tnd) // pack) * pack))
    return tb, tnd


def drop_path(x, key, drop_prob: float = 0.0, training: bool = False,
              target_block_bytes: int = 4 << 20):
    """Pallas implementation of timm-style drop_path (per-sample stochastic depth)."""
    if drop_prob == 0.0 or not training:
        return x
    drop_prob = float(drop_prob)
    if drop_prob >= 1.0:
        # timm only divides when keep_prob > 0; everything is dropped here.
        return jnp.zeros_like(x)
    keep_prob = 1.0 - drop_prob
    B = x.shape[0]

    # Per-sample scale, drawn in float32 (avoids low-precision Bernoulli bias):
    # floor(keep_prob + U[0,1)) in {0,1}, pre-multiplied by 1/keep_prob.
    rnd = jax.random.uniform(key, (B,), dtype=jnp.float32)
    scale = jnp.floor(keep_prob + rnd) * (1.0 / keep_prob)

    rows, cols = _choose_split(x.shape)
    x2 = x.reshape(rows, cols)
    reps = rows // B
    scale2 = (jnp.repeat(scale, reps) if reps > 1 else scale)[:, None]  # (rows, 1)

    TB, TND = _pick_block(rows, cols, x2.dtype.itemsize, target_block_bytes)
    grid = (pl.cdiv(rows, TB), pl.cdiv(cols, TND))

    # Explicit scoped-VMEM limit: double-buffered x + out blocks plus the
    # lane-padded (TB, 128) f32 scale buffers, with 30% margin. Floored at
    # 16 MiB, capped far below v7x's 64 MiB physical VMEM.
    block_bytes = TB * TND * x2.dtype.itemsize
    scale_block_bytes = TB * 128 * 4
    vmem_limit = int(2 * (2 * block_bytes + scale_block_bytes) * 1.3) + (2 << 20)
    vmem_limit = min(48 << 20, max(16 << 20, vmem_limit))

    out = pl.pallas_call(
        _drop_path_kernel,
        out_shape=jax.ShapeDtypeStruct((rows, cols), x.dtype),
        grid=grid,
        in_specs=[
            pl.BlockSpec((TB, 1), lambda bi, ni: (bi, 0)),      # scale (VMEM)
            pl.BlockSpec((TB, TND), lambda bi, ni: (bi, ni)),   # x
        ],
        out_specs=pl.BlockSpec((TB, TND), lambda bi, ni: (bi, ni)),
        compiler_params=pltpu.CompilerParams(
            dimension_semantics=("parallel", "parallel"),
            vmem_limit_bytes=vmem_limit),
    )(scale2, x2)
    return out.reshape(x.shape)


class DropPath:
    """Mirror of the PyTorch nn.Module (no parameters)."""

    def __init__(self, drop_prob=None):
        self.drop_prob = 0.0 if drop_prob is None else float(drop_prob)
        self.training = True  # PyTorch modules default to train mode

    def __call__(self, x, key):
        return drop_path(x, key, self.drop_prob, self.training)


if __name__ == "__main__":
    key = jax.random.PRNGKey(0)
    k_x, k_m, k_x2, k_m2, k_x3, k_m3 = jax.random.split(key, 6)

    # 1) MAE-style token tensor: batch=2, seq=8, hidden=32 (f32).
    B, N, D = 2, 8, 32
    x = jax.random.normal(k_x, (B, N, D), dtype=jnp.float32)
    module = DropPath(drop_prob=0.25)
    module.training = True
    out = jax.block_until_ready(module(x, k_m))
    keep_prob = 1.0 - module.drop_prob
    rnd = jax.random.uniform(k_m, (B,), dtype=jnp.float32)
    mask = jnp.floor(keep_prob + rnd).reshape(B, 1, 1)
    ref = x * (mask * (1.0 / keep_prob))
    assert out.shape == x.shape and out.dtype == x.dtype
    assert jnp.allclose(out, ref, atol=1e-6, rtol=1e-6), "mismatch vs reference (f32)"

    # 2) bf16, hidden=128 -> rows = B*N (exercises scale repeat); tiny block
    #    budget forces a multi-block grid along the sublane axis.
    B2, N2, D2 = 16, 8, 128
    x2 = jax.random.normal(k_x2, (B2, N2, D2), dtype=jnp.bfloat16)
    out2 = jax.block_until_ready(
        drop_path(x2, k_m2, drop_prob=0.5, training=True,
                  target_block_bytes=16 * 128 * 2))
    rnd2 = jax.random.uniform(k_m2, (B2,), dtype=jnp.float32)
    mask2 = jnp.floor(0.5 + rnd2).reshape(B2, 1, 1)
    ref2 = (x2.astype(jnp.float32) * (mask2 * 2.0)).astype(jnp.bfloat16)
    assert out2.shape == x2.shape and out2.dtype == x2.dtype
    assert jnp.allclose(out2.astype(jnp.float32), ref2.astype(jnp.float32),
                        atol=1e-2, rtol=1e-2), "mismatch vs reference (bf16)"

    # 3) Ragged shape: rows/cols not multiples of (8, 128) -> masked edge blocks.
    x3 = jax.random.normal(k_x3, (4, 5, 96), dtype=jnp.float32)
    out3 = jax.block_until_ready(drop_path(x3, k_m3, drop_prob=0.25, training=True))
    rnd3 = jax.random.uniform(k_m3, (4,), dtype=jnp.float32)
    mask3 = jnp.floor(0.75 + rnd3).reshape(4, 1, 1)
    ref3 = x3 * (mask3 * (1.0 / 0.75))
    assert jnp.allclose(out3, ref3, atol=1e-6, rtol=1e-6), "mismatch vs reference (ragged)"

    # 4) drop_prob == 1.0 -> zeros (no NaN from 0 * inf).
    out_all = jax.block_until_ready(drop_path(x, k_m, drop_prob=1.0, training=True))
    assert jnp.array_equal(out_all, jnp.zeros_like(x))

    # 5) Eval mode / drop_prob == 0 is identity.
    module.training = False
    assert jnp.array_equal(jax.block_until_ready(module(x, k_m)), x)

    print("KERNEL_OK")
</pallas_src>

<mosaic_0001>
module attributes {stable_mosaic.version = 11 : i64} {
  func.func @_drop_path_kernel(%arg0: i32, %arg1: i32, %arg2: memref<2x1xf32, #tpu.memory_space<vmem>>, %arg3: memref<2x256xf32, #tpu.memory_space<vmem>>, %arg4: memref<2x256xf32, #tpu.memory_space<vmem>>) attributes {dimension_semantics = [#tpu.dimension_semantics<parallel>, #tpu.dimension_semantics<parallel>], iteration_bounds = array<i64: 1, 1>, scalar_prefetch = 0 : i64, scratch_operands = 0 : i64, tpu.core_type = #tpu.core_type<tc>, window_params = [{transform_indices = @transform_0, window_bounds = array<i64: 2, 1>}, {transform_indices = @transform_1, window_bounds = array<i64: 2, 256>}, {transform_indices = @transform_2, window_bounds = array<i64: 2, 256>}]} {
    %c0 = arith.constant 0 : index
    %c0_0 = arith.constant 0 : index
    %0 = vector.load %arg3[%c0, %c0_0] : memref<2x256xf32, #tpu.memory_space<vmem>>, vector<2x256xf32>
    %c0_1 = arith.constant 0 : index
    %c0_2 = arith.constant 0 : index
    %1 = vector.load %arg2[%c0_1, %c0_2] : memref<2x1xf32, #tpu.memory_space<vmem>>, vector<2x1xf32>
    %2 = vector.broadcast %1 : vector<2x1xf32> to vector<2x256xf32>
    %3 = arith.mulf %0, %2 : vector<2x256xf32>
    %c0_3 = arith.constant 0 : index
    %c0_4 = arith.constant 0 : index
    %4 = vector.load %arg4[%c0_3, %c0_4] : memref<2x256xf32, #tpu.memory_space<vmem>>, vector<2x256xf32>
    tpu.vector_store %arg4[%c0_3, %c0_4], %3 {strides = array<i32>} : memref<2x256xf32, #tpu.memory_space<vmem>>, vector<2x256xf32>,
    return
  }
  func.func @transform_0(%arg0: i32, %arg1: i32) -> (i32, i32) {
    %c0_i32 = arith.constant 0 : i32
    %c0_i32_0 = arith.constant 0 : i32
    return %arg0, %c0_i32 : i32, i32
  }
  func.func @transform_1(%arg0: i32, %arg1: i32) -> (i32, i32) {
    %c0_i32 = arith.constant 0 : i32
    return %arg0, %arg1 : i32, i32
  }
  func.func @transform_2(%arg0: i32, %arg1: i32) -> (i32, i32) {
    %c0_i32 = arith.constant 0 : i32
    return %arg0, %arg1 : i32, i32
  }
}

</mosaic_0001>

<llo_original>
// kernel: tpu_custom_call.1
$region0: #{tpu_custom_call.1}
  #allocation0 [shape = 'u32[]', space=smem, size = 0x4, offset = 0x4, fixed_abs, tag = 'smem constant byte address 0x4 - core index']
  #allocation1 [shape = 'u32[144,128]{1,0:T(1,128)}', space=vmem, size = 0x12000, scoped, tag = 'internal scratch']
  %s0 = inlined_call_operand.vmem [shape: f32[2,1], index: 0, kind: input, shape index: {}]
  %s1 = inlined_call_operand.vmem [shape: f32[2,256], index: 1, kind: input, shape index: {}]
  %s2 = inlined_call_operand.hbm [shape: f32[2,256], index: 2, kind: output, shape index: {}]
  %s3 = sld [smem:[#allocation0]]
  $region18: #{tpu_custom_call.1} parent=0
    _
  %s5 = ssub.s32 1, %s3
  %s6 = scalar_select 0, %s5, %s3
  $region1: #{tpu_custom_call.1} parent=0
    #allocation2 [shape = 'u8[2048]{0}', space=vmem, size = 0x800, scoped, tag = 'output window, operand 0, single buffered']
    #allocation3 [shape = 's32[1]{0}', space=sflag, size = 0x4, scoped, tag = 'scoped memory for tpu_custom_call.1']
    %7 = vsyncpa [#allocation3], 0
    // Predicated region
    $region2: #{tpu_custom_call.1} parent=1 // pred_check
      _
    $region3: #{tpu_custom_call.1} parent=1 // pred_check_branch
      %9 = sbr.rel (0) target = $region5
    $region4: #{tpu_custom_call.1} parent=1 // pred_region
      _
    $region5: #{tpu_custom_call.1} parent=1 // pred_fallthru
      _
    // Predicated region
    $region6: #{tpu_custom_call.1} parent=1 // pred_check
      _
    $region7: #{tpu_custom_call.1} parent=1 // pred_check_branch
      %11 = sbr.rel (0) target = $region9
    $region8: #{tpu_custom_call.1} parent=1 // pred_region
      _
    $region9: #{tpu_custom_call.1} parent=1 // pred_fallthru
      _
    %v12 = vld [vmem:[%s1] sm:$0xf]
    %v13 = vld [vmem:[%s0] sm:$0x3]
    %15 = vset.pattern.permute.xlu0 0
    %16 = vperm.xlu0 %15, %v13
    %v17 = vpop.permute.xlu0 %16
    %v19 = vunpack.c.l.s4 269488144
    %v20 = vunpack.c.0.s8 %v19
    %v21 = vlaneseq
    %v22 = vshrl.u32 %v21, 7
    %v23 = vsub.s32 %v20, %v22
    %v24 = vrot.slane %v17, %v23
    %v26 = vmul.f32 %v12, %v24
    %27 = vst [vmem:[#allocation2] sm:$0xf] %v26
    // Predicated region
    $region10: #{tpu_custom_call.1} parent=1 // pred_check
      _
    $region11: #{tpu_custom_call.1} parent=1 // pred_check_branch
      %29 = sbr.rel (0) target = $region13
    $region12: #{tpu_custom_call.1} parent=1 // pred_region
      %s31 = ssub.s32 64, 64
      %32 = vsyncadd [#allocation3], %s31
      %s34 = sshll.u32 [#allocation2], 4
      %s35 = int_to_ptr.vmem [resolvable:$true] %s34
      %37 = dma.vmem_to_hbm [thread:$0]  %s35, 64, %s2, [#allocation3]
    $region13: #{tpu_custom_call.1} parent=1 // pred_fallthru
      _
    // Predicated region
    $region14: #{tpu_custom_call.1} parent=1 // pred_check
      _
    $region15: #{tpu_custom_call.1} parent=1 // pred_check_branch
      %39 = sbr.rel (0) target = $region17
    $region16: #{tpu_custom_call.1} parent=1 // pred_region
      %40 = dma.done [#allocation3], 64
    $region17: #{tpu_custom_call.1} parent=1 // pred_fallthru
      _
    %41 = vsyncpa [#allocation3], 1

</llo_original>
